<compile_context>
chip_gen: v5e
topology: v5e:2x2
jax: 0.10.0
libtpu: 0.0.40
codegen_flags: <defaults>
</compile_context>

<pallas_src>
import functools

import jax
import jax.numpy as jnp
from jax import lax
from jax.experimental import pallas as pl
from jax.experimental.pallas import tpu as pltpu

LANES = 128
ACC_ROWS = 32          # accumulator sublane-rows: 4 independent f32 vregs
NUM_SPLITS = 2         # leading "parallel" grid axis (v7x megacore; loop elsewhere)


def _round_up(x, m):
    return ((x + m - 1) // m) * m


def _default_block_rows():
    """Row-block size (x128 lanes): ~2-4 MiB per input block per buffer."""
    try:
        kind = jax.devices()[0].device_kind.lower()
    except Exception:
        return 4096
    if "v5 lite" in kind or "v5lite" in kind or "v5e" in kind:
        return 4096   # v5e: ~820 GB/s HBM, 16 MiB default scoped VMEM
    return 8192       # v6e / v7x: 1.4-3.2 TB/s HBM, 32 MiB scoped VMEM


def _focal_modulator(one_minus_pt, gamma):
    """(1 - pt) ** gamma, specialized for small integer gamma (EUP saving)."""
    g = float(gamma)
    if g == 0.0:
        return jnp.ones_like(one_minus_pt)
    if g.is_integer() and 1.0 <= g <= 8.0:
        out = one_minus_pt
        for _ in range(int(g) - 1):
            out = out * one_minus_pt
        return out
    return one_minus_pt ** g


def _focal_loss_kernel(pred_ref, tgt_ref, out_ref, acc_ref, *,
                       gamma, alpha, n_valid, tile_rows,
                       binary_targets, need_mask):
    k = pl.program_id(1)

    @pl.when(k == 0)
    def _():
        acc_ref[...] = jnp.zeros_like(acc_ref)

    x = pred_ref[...].astype(jnp.float32)
    t = tgt_ref[...].astype(jnp.float32)

    # Numerically stable binary_cross_entropy_with_logits (reduction='none'):
    #   bce = max(x, 0) - x*t + log(1 + exp(-|x|))
    e = jnp.exp(-jnp.abs(x))
    bce = jnp.maximum(x, 0.0) - x * t + jnp.log1p(e)

    if binary_targets:
        # pt = exp(-bce); for t in {0,1}: exp(x*t - max(x,0)) is a select,
        # which drops the second exp (EUP pressure).
        num = jnp.where((t > 0.5) == (x > 0.0), 1.0, e)
        pt = num / (1.0 + e)
    else:
        pt = jnp.exp(-bce)   # general (soft) targets

    # alpha*t + (1-alpha)*(1-t)  ==  (1-alpha) + (2*alpha - 1)*t  (one FMA)
    coef = 2.0 * alpha - 1.0
    if coef == 0.0:
        a = jnp.float32(1.0 - alpha)
    else:
        a = jnp.float32(1.0 - alpha) + jnp.float32(coef) * t

    fl = a * _focal_modulator(1.0 - pt, gamma) * bce

    if need_mask:
        # Zero out padded lanes/rows and duplicate (clamped) blocks.
        # int32 flat index: valid for n_valid < 2**31 elements.
        blk = pl.program_id(0) * pl.num_programs(1) + k
        base = blk * (tile_rows * LANES)
        row = lax.broadcasted_iota(jnp.int32, (tile_rows, LANES), 0)
        col = lax.broadcasted_iota(jnp.int32, (tile_rows, LANES), 1)
        flat = row * LANES + col
        fl = jnp.where(flat < (n_valid - base), fl, 0.0)

    # Fold (tile_rows, 128) -> (32, 128): pure elementwise VPU adds into 4
    # independent accumulator vregs; no cross-lane XLU work in the hot loop.
    acc_ref[...] += jnp.sum(fl.reshape(-1, ACC_ROWS, LANES), axis=0)

    @pl.when(k == pl.num_programs(1) - 1)
    def _():
        out_ref[0, 0] = jnp.sum(acc_ref[...])   # single cross-lane reduce


def binary_focal_loss(pred, target, gamma=2.0, alpha=0.5, loss_weight=1.0,
                      block_rows=None, binary_targets=None):
    """Pallas equivalent of BinaryFocalLoss(logits=True, reduce=True).forward."""
    assert 0.0 < alpha < 1.0
    assert pred.shape == target.shape
    n_valid = int(pred.size)
    assert n_valid > 0

    if block_rows is None:
        block_rows = _default_block_rows()
    if binary_targets is None:
        binary_targets = (target.dtype == jnp.bool_
                          or jnp.issubdtype(target.dtype, jnp.integer))
    if target.dtype == jnp.bool_:
        target = target.astype(jnp.int8)

    # Flatten and view as (n_rows, 128). No full-array pad in the common
    # 128-aligned case; otherwise pad only to the next lane multiple (padded
    # tail is masked in-kernel, pad value irrelevant).
    # TODO(synk): a 1-D BlockSpec could drop even this small pad.
    pred_f = jnp.ravel(pred)
    tgt_f = jnp.ravel(target)
    n_rows = pl.cdiv(n_valid, LANES)
    lane_pad = n_rows * LANES - n_valid
    if lane_pad:
        pred_f = jnp.pad(pred_f, (0, lane_pad))
        tgt_f = jnp.pad(tgt_f, (0, lane_pad))
    pred2d = pred_f.reshape(n_rows, LANES)
    tgt2d = tgt_f.reshape(n_rows, LANES)

    # Balanced tile sizing (multiple of 32 sublane-rows so int8/bool tiles
    # pack cleanly); block count rounded to the core split.
    raw_blocks = pl.cdiv(n_rows, int(block_rows))
    num_splits = NUM_SPLITS if raw_blocks >= 2 else 1
    num_blocks = _round_up(raw_blocks, num_splits)
    tile_rows = max(_round_up(pl.cdiv(n_rows, num_blocks), ACC_ROWS), ACC_ROWS)
    inner_steps = num_blocks // num_splits
    last_blk = max((n_rows - 1) // tile_rows, 0)
    need_mask = (num_blocks * tile_rows * LANES) != n_valid

    if n_rows < tile_rows:
        # Single-block small/medium input: pad rows up to one full tile
        # (bounded copy; larger inputs use >=2 blocks and never hit this).
        pred2d = jnp.pad(pred2d, ((0, tile_rows - n_rows), (0, 0)))
        tgt2d = jnp.pad(tgt2d, ((0, tile_rows - n_rows), (0, 0)))

    def in_map(p, k):
        blk = p * inner_steps + k
        # Clamp keeps every DMA in-bounds; duplicate blocks contribute zero
        # because their flat indices are >= n_valid (masked in-kernel).
        return (jnp.minimum(blk, last_blk), 0)

    kernel = functools.partial(
        _focal_loss_kernel,
        gamma=float(gamma),
        alpha=float(alpha),
        n_valid=n_valid,
        tile_rows=tile_rows,
        binary_targets=bool(binary_targets),
        need_mask=bool(need_mask),
    )

    partials = pl.pallas_call(
        kernel,
        out_shape=jax.ShapeDtypeStruct((num_splits, 1), jnp.float32),
        grid_spec=pltpu.PrefetchScalarGridSpec(
            num_scalar_prefetch=0,
            grid=(num_splits, inner_steps),
            in_specs=[
                pl.BlockSpec((tile_rows, LANES), in_map),
                pl.BlockSpec((tile_rows, LANES), in_map),
            ],
            out_specs=pl.BlockSpec((1, 1), lambda p, k: (p, 0),
                                   memory_space=pltpu.SMEM),
            scratch_shapes=[pltpu.VMEM((ACC_ROWS, LANES), jnp.float32)],
        ),
        compiler_params=pltpu.CompilerParams(
            dimension_semantics=("parallel", "arbitrary"),
            vmem_limit_bytes=32 * 1024 * 1024,
        ),
    )(pred2d, tgt2d)

    return jnp.sum(partials) * jnp.float32(loss_weight / n_valid)


def _reference(pred, target, gamma=2.0, alpha=0.5, loss_weight=1.0):
    x = pred.astype(jnp.float32)
    t = target.astype(jnp.float32)
    bce = jnp.maximum(x, 0.0) - x * t + jnp.log1p(jnp.exp(-jnp.abs(x)))
    pt = jnp.exp(-bce)
    a = alpha * t + (1 - alpha) * (1 - t)
    fl = a * (1 - pt) ** gamma * bce
    return jnp.mean(fl) * loss_weight


if __name__ == "__main__":
    key = jax.random.PRNGKey(0)
    k1, k2, k3, k4, k5, k6 = jax.random.split(key, 6)

    # 1) (2,4,16,16) logit map, float {0,1} targets (general soft-target path).
    pred = jax.random.normal(k1, (2, 4, 16, 16), dtype=jnp.float32)
    target = jax.random.bernoulli(k2, 0.3, (2, 4, 16, 16)).astype(jnp.float32)
    loss = jax.block_until_ready(binary_focal_loss(pred, target))
    ref = _reference(pred, target)
    assert jnp.allclose(loss, ref, rtol=1e-5, atol=1e-6), (loss, ref)

    # 2) Non-128-aligned N, soft targets, non-integer gamma (mask + pow path).
    pred2 = jax.random.normal(k3, (1000,), dtype=jnp.float32)
    tgt2 = jax.random.uniform(k4, (1000,), dtype=jnp.float32)
    loss2 = jax.block_until_ready(
        binary_focal_loss(pred2, tgt2, gamma=1.5, alpha=0.25, loss_weight=2.0))
    ref2 = _reference(pred2, tgt2, gamma=1.5, alpha=0.25, loss_weight=2.0)
    assert jnp.allclose(loss2, ref2, rtol=1e-5, atol=1e-6), (loss2, ref2)

    # 3) bf16 logits + int8 binary targets (narrow dtypes, binary-specialized
    #    pt); small block_rows forces a 2-split multi-block grid with an odd
    #    block count (exercises the clamped duplicate tile + masking).
    n3 = 96 * 128
    pred3 = jax.random.normal(k5, (n3,), dtype=jnp.float32).astype(jnp.bfloat16)
    tgt3 = jax.random.bernoulli(k6, 0.5, (n3,)).astype(jnp.int8)
    loss3 = jax.block_until_ready(
        binary_focal_loss(pred3, tgt3, gamma=2.0, alpha=0.75, loss_weight=1.0,
                          block_rows=32))
    ref3 = _reference(pred3.astype(jnp.float32), tgt3.astype(jnp.float32),
                      gamma=2.0, alpha=0.75, loss_weight=1.0)
    assert jnp.allclose(loss3, ref3, rtol=2e-5, atol=1e-6), (loss3, ref3)

    print("KERNEL_OK")
</pallas_src>

<mosaic_0001>
module attributes {stable_mosaic.version = 11 : i64} {
  func.func @_focal_loss_kernel(%arg0: i32, %arg1: i32, %arg2: memref<32x128xf32, #tpu.memory_space<vmem>>, %arg3: memref<32x128xf32, #tpu.memory_space<vmem>>, %arg4: memref<1x1xf32, #tpu.memory_space<smem>>, %arg5: memref<32x128xf32, #tpu.memory_space<vmem>>) attributes {dimension_semantics = [#tpu.dimension_semantics<parallel>, #tpu.dimension_semantics<arbitrary>], iteration_bounds = array<i64: 1, 1>, scalar_prefetch = 0 : i64, scratch_operands = 1 : i64, tpu.core_type = #tpu.core_type<tc>, window_params = [{transform_indices = @transform_0, window_bounds = array<i64: 32, 128>}, {transform_indices = @transform_1, window_bounds = array<i64: 32, 128>}, {transform_indices = @transform_2, window_bounds = array<i64: 1, 1>}]} {
    %c0_i32 = arith.constant 0 : i32
    %0 = arith.cmpi eq, %arg1, %c0_i32 : i32
    %1 = arith.extui %0 : i1 to i32
    %c0_i32_0 = arith.constant 0 : i32
    %2 = arith.cmpi ne, %1, %c0_i32_0 : i32
    scf.if %2 {
      %cst_16 = arith.constant 0.000000e+00 : f32
      %45 = vector.broadcast %cst_16 : f32 to vector<32x128xf32>
      %c0_17 = arith.constant 0 : index
      %c0_18 = arith.constant 0 : index
      %46 = vector.load %arg5[%c0_17, %c0_18] : memref<32x128xf32, #tpu.memory_space<vmem>>, vector<32x128xf32>
      tpu.vector_store %arg5[%c0_17, %c0_18], %45 {strides = array<i32>} : memref<32x128xf32, #tpu.memory_space<vmem>>, vector<32x128xf32>,
    } else {
    }
    %c0 = arith.constant 0 : index
    %c0_1 = arith.constant 0 : index
    %3 = vector.load %arg2[%c0, %c0_1] : memref<32x128xf32, #tpu.memory_space<vmem>>, vector<32x128xf32>
    %c0_2 = arith.constant 0 : index
    %c0_3 = arith.constant 0 : index
    %4 = vector.load %arg3[%c0_2, %c0_3] : memref<32x128xf32, #tpu.memory_space<vmem>>, vector<32x128xf32>
    %5 = math.absf %3 : vector<32x128xf32>
    %cst = arith.constant 0.000000e+00 : f32
    %6 = vector.broadcast %cst : f32 to vector<32x128xf32>
    %7 = arith.subf %6, %5 : vector<32x128xf32>
    %8 = math.exp %7 : vector<32x128xf32>
    %cst_4 = arith.constant 0.000000e+00 : f32
    %9 = vector.broadcast %cst_4 : f32 to vector<32x128xf32>
    %10 = arith.maximumf %3, %9 : vector<32x128xf32>
    %11 = arith.mulf %3, %4 : vector<32x128xf32>
    %12 = arith.subf %10, %11 : vector<32x128xf32>
    %13 = math.log1p %8 : vector<32x128xf32>
    %14 = arith.addf %12, %13 : vector<32x128xf32>
    %cst_5 = arith.constant 0.000000e+00 : f32
    %15 = vector.broadcast %cst_5 : f32 to vector<32x128xf32>
    %16 = arith.subf %15, %14 : vector<32x128xf32>
    %17 = math.exp %16 : vector<32x128xf32>
    %cst_6 = arith.constant 1.000000e+00 : f32
    %18 = vector.broadcast %cst_6 : f32 to vector<32x128xf32>
    %19 = arith.subf %18, %17 : vector<32x128xf32>
    %20 = arith.mulf %19, %19 : vector<32x128xf32>
    %cst_7 = arith.constant 5.000000e-01 : f32
    %21 = vector.broadcast %cst_7 : f32 to vector<32x128xf32>
    %22 = arith.mulf %21, %20 : vector<32x128xf32>
    %23 = arith.mulf %22, %14 : vector<32x128xf32>
    %c1_i32 = arith.constant 1 : i32
    %24 = arith.muli %arg0, %c1_i32 : i32
    %25 = arith.addi %24, %arg1 : i32
    %c4096_i32 = arith.constant 4096 : i32
    %26 = arith.muli %25, %c4096_i32 : i32
    %27 = tpu.iota {dimensions = array<i32: 0>} : vector<32x128xi32>
    %28 = tpu.iota {dimensions = array<i32: 1>} : vector<32x128xi32>
    %c128_i32 = arith.constant 128 : i32
    %29 = vector.broadcast %c128_i32 : i32 to vector<32x128xi32>
    %30 = arith.muli %27, %29 : vector<32x128xi32>
    %31 = arith.addi %30, %28 : vector<32x128xi32>
    %c2048_i32 = arith.constant 2048 : i32
    %32 = arith.subi %c2048_i32, %26 : i32
    %33 = vector.broadcast %32 : i32 to vector<32x128xi32>
    %34 = arith.cmpi slt, %31, %33 : vector<32x128xi32>
    %cst_8 = arith.constant 0.000000e+00 : f32
    %35 = vector.broadcast %cst_8 : f32 to vector<32x128xf32>
    %36 = arith.select %34, %23, %35 : vector<32x128xi1>, vector<32x128xf32>
    %c0_9 = arith.constant 0 : index
    %c0_10 = arith.constant 0 : index
    %37 = vector.load %arg5[%c0_9, %c0_10] : memref<32x128xf32, #tpu.memory_space<vmem>>, vector<32x128xf32>
    %38 = vector.shape_cast %36 : vector<32x128xf32> to vector<1x32x128xf32>
    %cst_11 = arith.constant dense<0.000000e+00> : vector<32x128xf32>
    %39 = vector.multi_reduction <add>, %38, %cst_11 [0] : vector<1x32x128xf32> to vector<32x128xf32>
    %40 = arith.addf %37, %39 : vector<32x128xf32>
    %c0_12 = arith.constant 0 : index
    %c0_13 = arith.constant 0 : index
    %41 = vector.load %arg5[%c0_12, %c0_13] : memref<32x128xf32, #tpu.memory_space<vmem>>, vector<32x128xf32>
    tpu.vector_store %arg5[%c0_12, %c0_13], %40 {strides = array<i32>} : memref<32x128xf32, #tpu.memory_space<vmem>>, vector<32x128xf32>,
    %c0_i32_14 = arith.constant 0 : i32
    %42 = arith.cmpi eq, %arg1, %c0_i32_14 : i32
    %43 = arith.extui %42 : i1 to i32
    %c0_i32_15 = arith.constant 0 : i32
    %44 = arith.cmpi ne, %43, %c0_i32_15 : i32
    scf.if %44 {
      %c0_16 = arith.constant 0 : index
      %c0_17 = arith.constant 0 : index
      %45 = vector.load %arg5[%c0_16, %c0_17] : memref<32x128xf32, #tpu.memory_space<vmem>>, vector<32x128xf32>
      %46 = vector.shape_cast %45 : vector<32x128xf32> to vector<1x32x128xf32>
      %cst_18 = arith.constant dense<0.000000e+00> : vector<1xf32>
      %47 = vector.multi_reduction <add>, %46, %cst_18 [1, 2] : vector<1x32x128xf32> to vector<1xf32>
      %48 = vector.shape_cast %47 : vector<1xf32> to vector<1x1x1xf32>
      %49 = vector.extract %48[0, 0, 0] : f32 from vector<1x1x1xf32>
      %c0_19 = arith.constant 0 : index
      %c0_20 = arith.constant 0 : index
      %50 = memref.load %arg4[%c0_19, %c0_20] : memref<1x1xf32, #tpu.memory_space<smem>>
      memref.store %49, %arg4[%c0_19, %c0_20] : memref<1x1xf32, #tpu.memory_space<smem>>
    } else {
    }
    return
  }
  func.func @transform_0(%arg0: i32, %arg1: i32) -> (i32, i32) {
    %c1_i32 = arith.constant 1 : i32
    %0 = arith.muli %arg0, %c1_i32 : i32
    %1 = arith.addi %0, %arg1 : i32
    %c0_i32 = arith.constant 0 : i32
    %2 = arith.minsi %1, %c0_i32 : i32
    %c0_i32_0 = arith.constant 0 : i32
    %c0_i32_1 = arith.constant 0 : i32
    return %2, %c0_i32_0 : i32, i32
  }
  func.func @transform_1(%arg0: i32, %arg1: i32) -> (i32, i32) {
    %c1_i32 = arith.constant 1 : i32
    %0 = arith.muli %arg0, %c1_i32 : i32
    %1 = arith.addi %0, %arg1 : i32
    %c0_i32 = arith.constant 0 : i32
    %2 = arith.minsi %1, %c0_i32 : i32
    %c0_i32_0 = arith.constant 0 : i32
    %c0_i32_1 = arith.constant 0 : i32
    return %2, %c0_i32_0 : i32, i32
  }
  func.func @transform_2(%arg0: i32, %arg1: i32) -> (i32, i32) {
    %c0_i32 = arith.constant 0 : i32
    %c0_i32_0 = arith.constant 0 : i32
    return %arg0, %c0_i32 : i32, i32
  }
}

</mosaic_0001>

<llo_original>
// kernel: tpu_custom_call.1
$region0: #{tpu_custom_call.1}
  #allocation0 [shape = 'u32[]', space=smem, size = 0x4, offset = 0x4, fixed_abs, tag = 'smem constant byte address 0x4 - core index']
  #allocation1 [shape = 'u32[72,128]{1,0:T(1,128)}', space=vmem, size = 0x9000, scoped, tag = 'internal scratch']
  #allocation2 [shape = 'f32[32,128]{1,0:T(8,128)}', space=vmem, size = 0x4000, scoped, tag = 'scratch operand']
  %s0 = inlined_call_operand.hbm [shape: f32[32,128], index: 0, kind: input, shape index: {}]
  %s1 = inlined_call_operand.hbm [shape: f32[32,128], index: 1, kind: input, shape index: {}]
  %s2 = inlined_call_operand.hbm [shape: f32[1,1], index: 2, kind: output, shape index: {}]
  %s3 = sld [smem:[#allocation0]]
  $region34: #{tpu_custom_call.1} parent=0
    _
  %s5 = ssub.s32 1, %s3
  %s6 = scalar_select 0, %s5, %s3
  $region1: #{tpu_custom_call.1} parent=0
    #allocation3 [shape = 'u8[16384]{0}', space=vmem, size = 0x4000, scoped, tag = 'input window, operand 0, single buffered']
    #allocation4 [shape = 's32[1]{0}', space=sflag, size = 0x4, scoped, tag = 'scoped memory for tpu_custom_call.1']
    #allocation5 [shape = 's32[1]{0}', space=sflag, size = 0x4, scoped, tag = 'scoped memory for tpu_custom_call.1']
    #allocation6 [shape = 'u8[16384]{0}', space=vmem, size = 0x4000, scoped, tag = 'input window, operand 1, single buffered']
    #allocation7 [shape = 's32[1]{0}', space=sflag, size = 0x4, scoped, tag = 'scoped memory for tpu_custom_call.1']
    #allocation8 [shape = 'u8[512]{0}', space=smem, size = 0x200, scoped, tag = 'output window, operand 0, single buffered']
    %7 = vsyncpa [#allocation4], 0
    %8 = vsyncpa [#allocation7], 0
    %9 = vsyncpa [#allocation5], 0
    // Predicated region
    $region2: #{tpu_custom_call.1} parent=1 // pred_check
      _
    $region3: #{tpu_custom_call.1} parent=1 // pred_check_branch
      %11 = sbr.rel (0) target = $region5
    $region4: #{tpu_custom_call.1} parent=1 // pred_region
      %s12 = sadd.s32 0, 0
      %p13 = scmp.lt.s32.totalorder %s12, 0
      %s14 = scalar_select %p13, %s12, 0
      %s15 = smul.u32 4, %s14
      %17 = vsyncadd [#allocation4], 0
      %s18 = smul.addr %s15, 8
      %s19 = scalar_lea.hbm %s0, %s18
      %s20 = sshll.u32 %s19, 4
      %s21 = int_to_ptr.hbm [resolvable:$true] %s20
      %s22 = sshll.u32 [#allocation3], 4
      %s23 = int_to_ptr.vmem [resolvable:$true] %s22
      %28 = dma.hbm_to_vmem [thread:$0]  %s21, 512, %s23, [#allocation4], 128, 128, 8
    $region5: #{tpu_custom_call.1} parent=1 // pred_fallthru
      _
    // Predicated region
    $region6: #{tpu_custom_call.1} parent=1 // pred_check
      _
    $region7: #{tpu_custom_call.1} parent=1 // pred_check_branch
      %30 = sbr.rel (0) target = $region9
    $region8: #{tpu_custom_call.1} parent=1 // pred_region
      %s31 = sadd.s32 0, 0
      %p32 = scmp.lt.s32.totalorder %s31, 0
      %s33 = scalar_select %p32, %s31, 0
      %s34 = smul.u32 4, %s33
      %36 = vsyncadd [#allocation7], 0
      %s37 = smul.addr %s34, 8
      %s38 = scalar_lea.hbm %s1, %s37
      %s39 = sshll.u32 %s38, 4
      %s40 = int_to_ptr.hbm [resolvable:$true] %s39
      %s41 = sshll.u32 [#allocation6], 4
      %s42 = int_to_ptr.vmem [resolvable:$true] %s41
      %47 = dma.hbm_to_vmem [thread:$0]  %s40, 512, %s42, [#allocation7], 128, 128, 8
    $region9: #{tpu_custom_call.1} parent=1 // pred_fallthru
      _
    // Predicated region
    $region10: #{tpu_custom_call.1} parent=1 // pred_check
      _
    $region11: #{tpu_custom_call.1} parent=1 // pred_check_branch
      %49 = sbr.rel (0) target = $region13
    $region12: #{tpu_custom_call.1} parent=1 // pred_region
      %51 = dma.done [#allocation4], 512
    $region13: #{tpu_custom_call.1} parent=1 // pred_fallthru
      _
    // Predicated region
    $region14: #{tpu_custom_call.1} parent=1 // pred_check
      _
    $region15: #{tpu_custom_call.1} parent=1 // pred_check_branch
      %53 = sbr.rel (0) target = $region17
    $region16: #{tpu_custom_call.1} parent=1 // pred_region
      %55 = dma.done [#allocation7], 512
    $region17: #{tpu_custom_call.1} parent=1 // pred_fallthru
      _
    %s56 = sadd.s32 0, 0
    %p57 = scmp.lt.s32.totalorder %s56, 0
    %s58 = scalar_select %p57, %s56, 0
    %s59 = smul.u32 4, %s58
    %s60 = sadd.s32 0, 0
    %p61 = scmp.lt.s32.totalorder %s60, 0
    %s62 = scalar_select %p61, %s60, 0
    %s63 = smul.u32 4, %s62
    %p64 = scmp.eq.s32.totalorder 0, 0
    // Predicated region
    $region18: #{tpu_custom_call.1} parent=1 // pred_check
      %p65 = pneg %p64
    $region19: #{tpu_custom_call.1} parent=1 // pred_check_branch
      %67 = sbr.rel (%p65) target = $region21
    $region20: #{tpu_custom_call.1} parent=1 // pred_region
      %68 = vst [vmem:[#allocation2] sm:$0xff] 0.0
      %69 = vst [vmem:[#allocation2 + $0x8] sm:$0xff] 0.0
      %70 = vst [vmem:[#allocation2 + $0x10] sm:$0xff] 0.0
      %71 = vst [vmem:[#allocation2 + $0x18] sm:$0xff] 0.0
    $region21: #{tpu_custom_call.1} parent=1 // pred_fallthru
      _
    %v72 = vld [vmem:[#allocation3] sm:$0xff]
    %v73 = vld [vmem:[#allocation3 + $0x8] sm:$0xff]
    %v74 = vld [vmem:[#allocation3 + $0x10] sm:$0xff]
    %v75 = vld [vmem:[#allocation3 + $0x18] sm:$0xff]
    %v76 = vld [vmem:[#allocation6] sm:$0xff]
    %v77 = vld [vmem:[#allocation6 + $0x8] sm:$0xff]
    %v78 = vld [vmem:[#allocation6 + $0x10] sm:$0xff]
    %v79 = vld [vmem:[#allocation6 + $0x18] sm:$0xff]
    %v80 = vand.u32 2147483647, %v72
    %v81 = vand.u32 2147483647, %v73
    %v82 = vand.u32 2147483647, %v74
    %v83 = vand.u32 2147483647, %v75
    %v84 = vsub.f32 0.0, %v80
    %v85 = vsub.f32 0.0, %v81
    %v86 = vsub.f32 0.0, %v82
    %v87 = vsub.f32 0.0, %v83
    %v88 = vmul.f32 %v84, 1.442695
    %v89 = vpow.pop %v88
    %v90 = vmul.f32 %v85, 1.442695
    %v91 = vpow.pop %v90
    %v92 = vmul.f32 %v86, 1.442695
    %v93 = vpow.pop %v92
    %v94 = vmul.f32 %v87, 1.442695
    %v95 = vpow.pop %v94
    %v96 = vmax.f32 %v72, 0.0
    %v97 = vmax.f32 %v73, 0.0
    %v98 = vmax.f32 %v74, 0.0
    %v99 = vmax.f32 %v75, 0.0
    %v100 = vmul.f32 %v72, %v76
    %v101 = vmul.f32 %v73, %v77
    %v102 = vmul.f32 %v74, %v78
    %v103 = vmul.f32 %v75, %v79
    %v104 = vsub.f32 %v96, %v100
    %v105 = vsub.f32 %v97, %v101
    %v106 = vsub.f32 %v98, %v102
    %v107 = vsub.f32 %v99, %v103
    %v108 = vadd.f32 %v89, 1.0
    %v109 = vlog2.pop %v108
    %v110 = vmul.f32 %v109, 0.6931472
    %v111 = vmul.f32 -0.5, %v89
    %v112 = vadd.f32 %v111, 1.0
    %v113 = vmul.f32 %v112, %v89
    %v114 = vand.u32 2147483647, %v89
    %vm115 = vcmp.lt.f32.partialorder %v114, 0.0004427343
    %v116 = vsel %vm115, %v113, %v110
    %v117 = vadd.f32 %v91, 1.0
    %v118 = vlog2.pop %v117
    %v119 = vmul.f32 %v118, 0.6931472
    %v120 = vmul.f32 -0.5, %v91
    %v121 = vadd.f32 %v120, 1.0
    %v122 = vmul.f32 %v121, %v91
    %v123 = vand.u32 2147483647, %v91
    %vm124 = vcmp.lt.f32.partialorder %v123, 0.0004427343
    %v125 = vsel %vm124, %v122, %v119
    %v126 = vadd.f32 %v93, 1.0
    %v127 = vlog2.pop %v126
    %v128 = vmul.f32 %v127, 0.6931472
    %v129 = vmul.f32 -0.5, %v93
    %v130 = vadd.f32 %v129, 1.0
    %v131 = vmul.f32 %v130, %v93
    %v132 = vand.u32 2147483647, %v93
    %vm133 = vcmp.lt.f32.partialorder %v132, 0.0004427343
    %v134 = vsel %vm133, %v131, %v128
    %v135 = vadd.f32 %v95, 1.0
    %v136 = vlog2.pop %v135
    %v137 = vmul.f32 %v136, 0.6931472
    %v138 = vmul.f32 -0.5, %v95
    %v139 = vadd.f32 %v138, 1.0
    %v140 = vmul.f32 %v139, %v95
    %v141 = vand.u32 2147483647, %v95
    %vm142 = vcmp.lt.f32.partialorder %v141, 0.0004427343
    %v143 = vsel %vm142, %v140, %v137
    %v144 = vadd.f32 %v104, %v116
    %v145 = vadd.f32 %v105, %v125
    %v146 = vadd.f32 %v106, %v134
    %v147 = vadd.f32 %v107, %v143
    %v148 = vsub.f32 0.0, %v144
    %v149 = vsub.f32 0.0, %v145
    %v150 = vsub.f32 0.0, %v146
    %v151 = vsub.f32 0.0, %v147
    %v152 = vmul.f32 %v148, 1.442695
    %v153 = vpow.pop %v152
    %v154 = vmul.f32 %v149, 1.442695
    %v155 = vpow.pop %v154
    %v156 = vmul.f32 %v150, 1.442695
    %v157 = vpow.pop %v156
    %v158 = vmul.f32 %v151, 1.442695
    %v159 = vpow.pop %v158
    %v160 = vsub.f32 1.0, %v153
    %v161 = vsub.f32 1.0, %v155
    %v162 = vsub.f32 1.0, %v157
    %v163 = vsub.f32 1.0, %v159
    %v164 = vmul.f32 %v160, %v160
    %v165 = vmul.f32 %v161, %v161
    %v166 = vmul.f32 %v162, %v162
    %v167 = vmul.f32 %v163, %v163
    %v168 = vmul.f32 %v164, 0.5
    %v169 = vmul.f32 %v165, 0.5
    %v170 = vmul.f32 %v166, 0.5
    %v171 = vmul.f32 %v167, 0.5
    %v172 = vmul.f32 %v168, %v144
    %v173 = vmul.f32 %v169, %v145
    %v174 = vmul.f32 %v170, %v146
    %v175 = vmul.f32 %v171, %v147
    %s176 = sadd.s32 0, 0
    %s177 = smul.u32 %s176, 4096
    %v178 = vlaneseq
    %v179 = vshrl.u32 %v178, 7
    %v180 = vadd.s32 %v179, 8
    %v181 = vadd.s32 %v179, 16
    %v182 = vadd.s32 %v179, 24
    %v183 = vlaneseq
    %v184 = vand.u32 %v183, 127
    %v185 = vmul.u32 %v179, 128
    %v186 = vmul.u32 %v180, 128
    %v187 = vmul.u32 %v181, 128
    %v188 = vmul.u32 %v182, 128
    %v189 = vadd.s32 %v185, %v184
    %v190 = vadd.s32 %v186, %v184
    %v191 = vadd.s32 %v187, %v184
    %v192 = vadd.s32 %v188, %v184
    %s193 = ssub.s32 2048, %s177
    %v194 = vstv %s193
    %vm195 = vcmp.lt.s32.totalorder %v189, %v194
    %vm196 = vcmp.lt.s32.totalorder %v190, %v194
    %vm197 = vcmp.lt.s32.totalorder %v191, %v194
    %vm198 = vcmp.lt.s32.totalorder %v192, %v194
    %v199 = vsel %vm195, %v172, 0.0
    %v200 = vsel %vm196, %v173, 0.0
    %v201 = vsel %vm197, %v174, 0.0
    %v202 = vsel %vm198, %v175, 0.0
    %v203 = vld [vmem:[#allocation2] sm:$0xff]
    %v204 = vld [vmem:[#allocation2 + $0x8] sm:$0xff]
    %v205 = vld [vmem:[#allocation2 + $0x10] sm:$0xff]
    %v206 = vld [vmem:[#allocation2 + $0x18] sm:$0xff]
    %v207 = vadd.f32 %v199, 0.0
    %v208 = vadd.f32 %v200, 0.0
    %v209 = vadd.f32 %v201, 0.0
    %v210 = vadd.f32 %v202, 0.0
    %v211 = vadd.f32 %v203, %v207
    %v212 = vadd.f32 %v204, %v208
    %v213 = vadd.f32 %v205, %v209
    %v214 = vadd.f32 %v206, %v210
    %215 = vst [vmem:[#allocation2] sm:$0xff] %v211
    %216 = vst [vmem:[#allocation2 + $0x8] sm:$0xff] %v212
    %217 = vst [vmem:[#allocation2 + $0x10] sm:$0xff] %v213
    %218 = vst [vmem:[#allocation2 + $0x18] sm:$0xff] %v214
    // Predicated region
    $region22: #{tpu_custom_call.1} parent=1 // pred_check
      %p219 = pneg %p64
    $region23: #{tpu_custom_call.1} parent=1 // pred_check_branch
      %221 = sbr.rel (%p219) target = $region25
    $region24: #{tpu_custom_call.1} parent=1 // pred_region
      %v222 = vld [vmem:[#allocation2] sm:$0xff]
      %v223 = vld [vmem:[#allocation2 + $0x8] sm:$0xff]
      %v224 = vld [vmem:[#allocation2 + $0x10] sm:$0xff]
      %v225 = vld [vmem:[#allocation2 + $0x18] sm:$0xff]
      %v226 = vadd.f32 %v222, %v223
      %v227 = vadd.f32 %v226, %v224
      %v228 = vadd.f32 %v227, %v225
      %229 = vadd.xlane.f32.xlu0 %v228
      %v230 = vpop.xlane.xlu0 %229
      %v231 = vrot.slane %v230, 4
      %v232 = vadd.f32 %v230, %v231
      %v233 = vrot.slane %v232, 2
      %v234 = vadd.f32 %v232, %v233
      %v235 = vrot.slane %v234, 1
      %v236 = vadd.f32 %v234, %v235
      %s237 = vtos %v236
      %s238 = scalar_lea.smem [#allocation8], 0
      %239 = sst [smem:[%s238]] %s237
    $region25: #{tpu_custom_call.1} parent=1 // pred_fallthru
      _
    // Predicated region
    $region26: #{tpu_custom_call.1} parent=1 // pred_check
      _
    $region27: #{tpu_custom_call.1} parent=1 // pred_check_branch
      %241 = sbr.rel (0) target = $region29
    $region28: #{tpu_custom_call.1} parent=1 // pred_region
      %243 = vsyncadd [#allocation5], 0
      %s245 = sshll.u32 %s2, 4
      %s246 = int_to_ptr.hbm [resolvable:$true] %s245
      %248 = dma.smem_to_hbm [#allocation8], 16, %s246, [#allocation5]
    $region29: #{tpu_custom_call.1} parent=1 // pred_fallthru
      _
    // Predicated region
    $region30: #{tpu_custom_call.1} parent=1 // pred_check
      _
    $region31: #{tpu_custom_call.1} parent=1 // pred_check_branch
      %250 = sbr.rel (0) target = $region33
    $region32: #{tpu_custom_call.1} parent=1 // pred_region
      %252 = dma.done [#allocation5], 16
    $region33: #{tpu_custom_call.1} parent=1 // pred_fallthru
      _
    %253 = sfence
    %254 = vsyncpa [#allocation4], 1
    %255 = vsyncpa [#allocation7], 1
    %256 = vsyncpa [#allocation5], 1

</llo_original>
